<compile_context>
chip_gen: v5e
topology: v5e:2x2
jax: 0.10.0
libtpu: 0.0.40
codegen_flags: <defaults>
</compile_context>

<pallas_src>
import functools

import jax
import jax.numpy as jnp
from jax import lax
from jax.experimental import pallas as pl
from jax.experimental.pallas import tpu as pltpu

# ---- small synthetic config (scaled-down versions of 1024/2048 -> 256) ----
N = 8            # batch (number of ROIs)
C1 = 64          # 'before_trans' channels   (module: 1024)
C2 = 128         # 'after_trans'  channels   (module: 2048)
DIM = 32         # embedding dim             (module: cfg.MODEL.EMBEDDING_DIM, e.g. 256)
D1 = DIM // 2    # per-projector split dims (even split since 2 feature maps)
D2 = DIM - D1
NUM_PIDS = 16    # OIM LUT size
CQ_SIZE = 8      # OIM circular-queue size
N_CLS = NUM_PIDS + CQ_SIZE
OIM_SCALAR = 30.0
BN_EPS = 1e-5

# Lane-dense layout, derived (not hard-coded) and asserted.
N_CLS_PAD = ((N_CLS + 127) // 128) * 128                 # padded class axis (zero LUT cols)
SLAB_W = ((DIM + N_CLS_PAD + 2 + 127) // 128) * 128      # [emb | logits_pad | norm | loss | 0pad]
assert DIM + N_CLS_PAD + 2 <= SLAB_W


def coat_reid_kernel(x_ref, w_ref, lut_ref, p_ref, lab_ref, out_ref,
                     *, oim_scalar, num_pids, n_cls):
    dim = w_ref.shape[1]          # static
    n_cls_pad = lut_ref.shape[1]  # static (lane-dense, multiple of 128)
    n = x_ref.shape[0]            # static
    slab_w = out_ref.shape[1]     # static

    # Fused projection: concat(x1,x2) @ block_diag(W1,W2) + [b1|b2]  (single MXU pass).
    # TODO(synk): at production sizes un-fuse into two lane-aligned dots (see header note).
    y = jnp.dot(x_ref[...], w_ref[...], preferred_element_type=jnp.float32) + p_ref[0:1, :]

    # Fused BatchNorm1d (training mode, biased batch stats); two-pass variance, EUP rsqrt.
    mu = jnp.mean(y, axis=0, keepdims=True)
    yc = y - mu
    var = jnp.mean(yc * yc, axis=0, keepdims=True)
    emb = p_ref[1:2, :] * yc * lax.rsqrt(var + BN_EPS) + p_ref[2:3, :]

    # L2 normalize; clamp on the squared norm (1e-24 == torch's clamp(min=1e-12) on the norm).
    # Reuse the reciprocal: norms = nsq * rsqrt(nsq) == sqrt(nsq)  (no extra EUP sqrt).
    nsq = jnp.sum(emb * emb, axis=1, keepdims=True)                 # (N, 1)
    inv = lax.rsqrt(jnp.maximum(nsq, 1e-24))
    emb_n = emb * inv
    norms = nsq * inv

    # rescaler = nn.BatchNorm1d(1, affine=True), training mode over the batch (two-pass).
    mu_n = jnp.mean(norms)
    nc = norms - mu_n
    var_n = jnp.mean(nc * nc)
    norms_scaled = p_ref[3, 0] * nc * lax.rsqrt(var_n + BN_EPS) + p_ref[3, 1]

    # OIM logits: scaled similarity against [LUT; CQ; zero pad] (lut pre-transposed, padded).
    logits = jnp.dot(emb_n, lut_ref[...], preferred_element_type=jnp.float32) * oim_scalar
    ids = lax.broadcasted_iota(jnp.int32, logits.shape, 1)
    logits_m = jnp.where(ids < n_cls, logits, jnp.float32(-1e30))   # mask padded classes

    # Cross-entropy over labeled identities (labels >= num_pids are ignored).
    lab = lab_ref[...]                                              # (N, 1) int32
    m = jnp.max(logits_m, axis=1, keepdims=True)
    lse = m + jnp.log(jnp.sum(jnp.exp(logits_m - m), axis=1, keepdims=True))
    onehot = (ids == lab).astype(jnp.float32)                       # valid labels < num_pids < n_cls
    picked = jnp.sum(onehot * logits_m, axis=1, keepdims=True)
    valid = ((lab >= 0) & (lab < num_pids)).astype(jnp.float32)
    nll = (lse - picked) * valid
    # All-unlabeled batch -> loss 0 via the denominator clamp.
    loss = jnp.sum(nll) / jnp.maximum(jnp.sum(valid), 1.0)

    # Assemble the full slab in registers; ONE unmasked, lane-dense writeback store.
    pad_w = slab_w - (dim + n_cls_pad + 2)
    slab = jnp.concatenate(
        [emb_n,                                     # [:, 0:dim]
         logits_m,                                  # [:, dim:dim+n_cls_pad] (pad cols = -1e30)
         norms_scaled,                              # [:, dim+n_cls_pad]
         jnp.broadcast_to(loss, (n, 1)),            # [:, dim+n_cls_pad+1]
         jnp.zeros((n, pad_w), jnp.float32)],
        axis=1)
    out_ref[...] = slab


def init_params(key):
    """Deterministic init matching NormAwareEmbedding.__init__, pre-fused for the kernel."""
    ks = jax.random.split(key, 5)
    # Linear weights ~ N(0, 0.01), stored transposed and packed block-diagonally so that
    # concat(x1, x2) @ w_fused == [x1 @ W1^T | x2 @ W2^T].
    w1 = 0.01 * jax.random.normal(ks[0], (C1, D1), jnp.float32)
    w2 = 0.01 * jax.random.normal(ks[2], (C2, D2), jnp.float32)
    w_fused = jnp.zeros((C1 + C2, DIM), jnp.float32)
    w_fused = w_fused.at[:C1, :D1].set(w1).at[C1:, D1:].set(w2)

    # Packed per-channel param slab: row0 = linear bias (0), row1 = BN gamma ~ N(0,.01),
    # row2 = BN beta (0), row3[0:2] = rescaler BN (gamma=1, beta=0).
    g1 = 0.01 * jax.random.normal(ks[1], (D1,), jnp.float32)
    g2 = 0.01 * jax.random.normal(ks[3], (D2,), jnp.float32)
    pslab = jnp.zeros((4, DIM), jnp.float32)
    pslab = pslab.at[1, :D1].set(g1).at[1, D1:].set(g2)
    pslab = pslab.at[3, 0].set(1.0)

    # OIM LUT + circular queue, stored transposed and zero-padded lane-dense:
    # (DIM, N_CLS_PAD); only the first N_CLS columns are real classes.
    lut_t = 0.1 * jax.random.normal(ks[4], (DIM, N_CLS), jnp.float32)
    lut_t_pad = jnp.zeros((DIM, N_CLS_PAD), jnp.float32).at[:, :N_CLS].set(lut_t)
    return {"w_fused": w_fused, "pslab": pslab, "lut_t": lut_t_pad}


@jax.jit
def coat_reid_forward(featmaps, labels, params):
    """featmaps: dict {'before_trans': (N,C1,1,1), 'after_trans': (N,C2,1,1)} (NCHW)."""
    x1 = featmaps["before_trans"].reshape(featmaps["before_trans"].shape[0], -1)   # (N, C1)
    x2 = featmaps["after_trans"].reshape(featmaps["after_trans"].shape[0], -1)     # (N, C2)
    x_cat = jnp.concatenate([x1, x2], axis=1).astype(jnp.float32)                  # (N, C1+C2)
    lab = labels.astype(jnp.int32).reshape(-1, 1)                                  # (N, 1)

    n = x_cat.shape[0]
    kernel = functools.partial(coat_reid_kernel, oim_scalar=OIM_SCALAR,
                               num_pids=NUM_PIDS, n_cls=N_CLS)
    vmem = pl.BlockSpec(memory_space=pltpu.VMEM)

    slab = pl.pallas_call(
        kernel,
        out_shape=jax.ShapeDtypeStruct((n, SLAB_W), jnp.float32),
        in_specs=[vmem] * 5,
        out_specs=vmem,
    )(x_cat, params["w_fused"], params["lut_t"], params["pslab"], lab)

    emb = slab[:, 0:DIM]                         # L2-normalized embeddings
    logits = slab[:, DIM:DIM + N_CLS]            # OIM logits (real classes only)
    loss = slab[0, DIM + N_CLS_PAD + 1]          # OIM cross-entropy loss
    # Rescaled norms (NormAwareEmbedding class scores) live at slab[:, DIM + N_CLS_PAD];
    # COAT_REID.forward does not return them, so they are left in the slab.

    # Returns mirror CascadedROIHeads: (loss_rcnn_reid_3rd, feats_reid_3rd, targets_reid_3rd, logits)
    return loss, emb, labels.astype(jnp.int32), logits


if __name__ == "__main__":
    key = jax.random.PRNGKey(0)
    kx1, kx2, klab, kp = jax.random.split(key, 4)

    featmaps = {
        "before_trans": jax.random.normal(kx1, (N, C1, 1, 1), jnp.float32),
        "after_trans": jax.random.normal(kx2, (N, C2, 1, 1), jnp.float32),
    }
    labels = jax.random.randint(klab, (N,), 0, NUM_PIDS)
    params = init_params(kp)

    loss, feats, targets, logits = coat_reid_forward(featmaps, labels, params)
    jax.block_until_ready((loss, feats, targets, logits))

    assert feats.shape == (N, DIM)
    assert logits.shape == (N, N_CLS)
    assert targets.shape == (N,)
    assert loss.shape == ()
    assert bool(jnp.isfinite(loss))
    print("KERNEL_OK")
</pallas_src>

<mosaic_0001>
module attributes {stable_mosaic.version = 11 : i64} {
  func.func @coat_reid_kernel(%arg0: memref<8x192xf32, #tpu.memory_space<vmem>>, %arg1: memref<192x32xf32, #tpu.memory_space<vmem>>, %arg2: memref<32x128xf32, #tpu.memory_space<vmem>>, %arg3: memref<4x32xf32, #tpu.memory_space<vmem>>, %arg4: memref<8x1xi32, #tpu.memory_space<vmem>>, %arg5: memref<8x256xf32, #tpu.memory_space<vmem>>) attributes {dimension_semantics = [], scalar_prefetch = 0 : i64, scratch_operands = 0 : i64, tpu.core_type = #tpu.core_type<tc>} {
    %c0 = arith.constant 0 : index
    %c0_0 = arith.constant 0 : index
    %0 = vector.load %arg0[%c0, %c0_0] : memref<8x192xf32, #tpu.memory_space<vmem>>, vector<8x192xf32>
    %c0_1 = arith.constant 0 : index
    %c0_2 = arith.constant 0 : index
    %1 = vector.load %arg1[%c0_1, %c0_2] : memref<192x32xf32, #tpu.memory_space<vmem>>, vector<192x32xf32>
    %cst = arith.constant dense<0.000000e+00> : vector<8x32xf32>
    %2 = tpu.matmul %0, %1, %cst {dimension_numbers = #tpu.dot_dimension_numbers<[1], [0], [0], [1], [0, 0, 1, 1], [], []>} : vector<8x192xf32>, vector<192x32xf32>, vector<8x32xf32> -> vector<8x32xf32>
    %c0_3 = arith.constant 0 : index
    %c0_4 = arith.constant 0 : index
    %3 = vector.load %arg3[%c0_3, %c0_4] : memref<4x32xf32, #tpu.memory_space<vmem>>, vector<1x32xf32>
    %4 = vector.broadcast %3 : vector<1x32xf32> to vector<8x32xf32>
    %5 = arith.addf %2, %4 : vector<8x32xf32>
    %cst_5 = arith.constant dense<0.000000e+00> : vector<32xf32>
    %6 = vector.multi_reduction <add>, %5, %cst_5 [0] : vector<8x32xf32> to vector<32xf32>
    %7 = vector.shape_cast %6 : vector<32xf32> to vector<1x32xf32>
    %cst_6 = arith.constant 8.000000e+00 : f32
    %8 = vector.broadcast %cst_6 : f32 to vector<1x32xf32>
    %9 = arith.divf %7, %8 : vector<1x32xf32>
    %10 = vector.broadcast %9 : vector<1x32xf32> to vector<8x32xf32>
    %11 = arith.subf %5, %10 : vector<8x32xf32>
    %12 = arith.mulf %11, %11 : vector<8x32xf32>
    %cst_7 = arith.constant dense<0.000000e+00> : vector<32xf32>
    %13 = vector.multi_reduction <add>, %12, %cst_7 [0] : vector<8x32xf32> to vector<32xf32>
    %14 = vector.shape_cast %13 : vector<32xf32> to vector<1x32xf32>
    %cst_8 = arith.constant 8.000000e+00 : f32
    %15 = vector.broadcast %cst_8 : f32 to vector<1x32xf32>
    %16 = arith.divf %14, %15 : vector<1x32xf32>
    %c1 = arith.constant 1 : index
    %c0_9 = arith.constant 0 : index
    %17 = vector.load %arg3[%c1, %c0_9] : memref<4x32xf32, #tpu.memory_space<vmem>>, vector<1x32xf32>
    %18 = vector.broadcast %17 : vector<1x32xf32> to vector<8x32xf32>
    %19 = arith.mulf %18, %11 : vector<8x32xf32>
    %cst_10 = arith.constant 9.99999974E-6 : f32
    %20 = vector.broadcast %cst_10 : f32 to vector<1x32xf32>
    %21 = arith.addf %16, %20 : vector<1x32xf32>
    %22 = math.rsqrt %21 : vector<1x32xf32>
    %23 = vector.broadcast %22 : vector<1x32xf32> to vector<8x32xf32>
    %24 = arith.mulf %19, %23 : vector<8x32xf32>
    %c2 = arith.constant 2 : index
    %c0_11 = arith.constant 0 : index
    %25 = vector.load %arg3[%c2, %c0_11] : memref<4x32xf32, #tpu.memory_space<vmem>>, vector<1x32xf32>
    %26 = vector.broadcast %25 : vector<1x32xf32> to vector<8x32xf32>
    %27 = arith.addf %24, %26 : vector<8x32xf32>
    %28 = arith.mulf %27, %27 : vector<8x32xf32>
    %cst_12 = arith.constant dense<0.000000e+00> : vector<8xf32>
    %29 = vector.multi_reduction <add>, %28, %cst_12 [1] : vector<8x32xf32> to vector<8xf32>
    %30 = vector.shape_cast %29 : vector<8xf32> to vector<8x1xf32>
    %cst_13 = arith.constant 1.000000e-24 : f32
    %31 = vector.broadcast %cst_13 : f32 to vector<8x1xf32>
    %32 = arith.maximumf %30, %31 : vector<8x1xf32>
    %33 = math.rsqrt %32 : vector<8x1xf32>
    %34 = vector.broadcast %33 : vector<8x1xf32> to vector<8x32xf32>
    %35 = arith.mulf %27, %34 : vector<8x32xf32>
    %36 = arith.mulf %30, %33 : vector<8x1xf32>
    %37 = vector.shape_cast %36 : vector<8x1xf32> to vector<1x8x1xf32>
    %cst_14 = arith.constant dense<0.000000e+00> : vector<1xf32>
    %38 = vector.multi_reduction <add>, %37, %cst_14 [1, 2] : vector<1x8x1xf32> to vector<1xf32>
    %39 = vector.shape_cast %38 : vector<1xf32> to vector<1x1x1xf32>
    %40 = vector.extract %39[0, 0, 0] : f32 from vector<1x1x1xf32>
    %cst_15 = arith.constant 8.000000e+00 : f32
    %41 = arith.divf %40, %cst_15 : f32
    %42 = vector.broadcast %41 : f32 to vector<8x1xf32>
    %43 = arith.subf %36, %42 : vector<8x1xf32>
    %44 = arith.mulf %43, %43 : vector<8x1xf32>
    %45 = vector.shape_cast %44 : vector<8x1xf32> to vector<1x8x1xf32>
    %cst_16 = arith.constant dense<0.000000e+00> : vector<1xf32>
    %46 = vector.multi_reduction <add>, %45, %cst_16 [1, 2] : vector<1x8x1xf32> to vector<1xf32>
    %47 = vector.shape_cast %46 : vector<1xf32> to vector<1x1x1xf32>
    %48 = vector.extract %47[0, 0, 0] : f32 from vector<1x1x1xf32>
    %cst_17 = arith.constant 8.000000e+00 : f32
    %49 = arith.divf %48, %cst_17 : f32
    %c3 = arith.constant 3 : index
    %c0_18 = arith.constant 0 : index
    %50 = vector.load %arg3[%c3, %c0_18] : memref<4x32xf32, #tpu.memory_space<vmem>>, vector<1x1xf32>
    %51 = vector.extract %50[0, 0] : f32 from vector<1x1xf32>
    %52 = vector.broadcast %51 : f32 to vector<8x1xf32>
    %53 = arith.mulf %52, %43 : vector<8x1xf32>
    %cst_19 = arith.constant 9.99999974E-6 : f32
    %54 = arith.addf %49, %cst_19 : f32
    %55 = math.rsqrt %54 : f32
    %56 = vector.broadcast %55 : f32 to vector<8x1xf32>
    %57 = arith.mulf %53, %56 : vector<8x1xf32>
    %c3_20 = arith.constant 3 : index
    %c1_21 = arith.constant 1 : index
    %58 = vector.load %arg3[%c3_20, %c1_21] : memref<4x32xf32, #tpu.memory_space<vmem>>, vector<1x1xf32>
    %59 = vector.extract %58[0, 0] : f32 from vector<1x1xf32>
    %60 = vector.broadcast %59 : f32 to vector<8x1xf32>
    %61 = arith.addf %57, %60 : vector<8x1xf32>
    %c0_22 = arith.constant 0 : index
    %c0_23 = arith.constant 0 : index
    %62 = vector.load %arg2[%c0_22, %c0_23] : memref<32x128xf32, #tpu.memory_space<vmem>>, vector<32x128xf32>
    %cst_24 = arith.constant dense<0.000000e+00> : vector<8x128xf32>
    %63 = tpu.matmul %35, %62, %cst_24 {dimension_numbers = #tpu.dot_dimension_numbers<[1], [0], [0], [1], [0, 0, 1, 1], [], []>} : vector<8x32xf32>, vector<32x128xf32>, vector<8x128xf32> -> vector<8x128xf32>
    %cst_25 = arith.constant 3.000000e+01 : f32
    %64 = vector.broadcast %cst_25 : f32 to vector<8x128xf32>
    %65 = arith.mulf %63, %64 : vector<8x128xf32>
    %66 = tpu.iota {dimensions = array<i32: 1>} : vector<8x128xi32>
    %c24_i32 = arith.constant 24 : i32
    %67 = vector.broadcast %c24_i32 : i32 to vector<8x128xi32>
    %68 = arith.cmpi slt, %66, %67 : vector<8x128xi32>
    %cst_26 = arith.constant -1.000000e+30 : f32
    %69 = vector.broadcast %cst_26 : f32 to vector<8x128xf32>
    %70 = arith.select %68, %65, %69 : vector<8x128xi1>, vector<8x128xf32>
    %c0_27 = arith.constant 0 : index
    %c0_28 = arith.constant 0 : index
    %71 = vector.load %arg4[%c0_27, %c0_28] : memref<8x1xi32, #tpu.memory_space<vmem>>, vector<8x1xi32>
    %cst_29 = arith.constant dense<0xFF800000> : vector<8xf32>
    %72 = vector.multi_reduction <maximumf>, %70, %cst_29 [1] : vector<8x128xf32> to vector<8xf32>
    %73 = vector.shape_cast %72 : vector<8xf32> to vector<8x1xf32>
    %74 = vector.broadcast %73 : vector<8x1xf32> to vector<8x128xf32>
    %75 = arith.subf %70, %74 : vector<8x128xf32>
    %76 = math.exp %75 : vector<8x128xf32>
    %cst_30 = arith.constant dense<0.000000e+00> : vector<8xf32>
    %77 = vector.multi_reduction <add>, %76, %cst_30 [1] : vector<8x128xf32> to vector<8xf32>
    %78 = vector.shape_cast %77 : vector<8xf32> to vector<8x1xf32>
    %79 = math.log %78 : vector<8x1xf32>
    %80 = arith.addf %73, %79 : vector<8x1xf32>
    %81 = vector.broadcast %71 : vector<8x1xi32> to vector<8x128xi32>
    %82 = arith.cmpi eq, %66, %81 : vector<8x128xi32>
    %83 = arith.extui %82 : vector<8x128xi1> to vector<8x128xi32>
    %84 = arith.sitofp %83 : vector<8x128xi32> to vector<8x128xf32>
    %85 = arith.mulf %84, %70 : vector<8x128xf32>
    %cst_31 = arith.constant dense<0.000000e+00> : vector<8xf32>
    %86 = vector.multi_reduction <add>, %85, %cst_31 [1] : vector<8x128xf32> to vector<8xf32>
    %87 = vector.shape_cast %86 : vector<8xf32> to vector<8x1xf32>
    %c0_i32 = arith.constant 0 : i32
    %88 = vector.broadcast %c0_i32 : i32 to vector<8x1xi32>
    %89 = arith.cmpi sge, %71, %88 : vector<8x1xi32>
    %c16_i32 = arith.constant 16 : i32
    %90 = vector.broadcast %c16_i32 : i32 to vector<8x1xi32>
    %91 = arith.cmpi slt, %71, %90 : vector<8x1xi32>
    %92 = arith.andi %89, %91 : vector<8x1xi1>
    %93 = arith.extui %92 : vector<8x1xi1> to vector<8x1xi32>
    %94 = arith.sitofp %93 : vector<8x1xi32> to vector<8x1xf32>
    %95 = arith.subf %80, %87 : vector<8x1xf32>
    %96 = arith.mulf %95, %94 : vector<8x1xf32>
    %97 = vector.shape_cast %96 : vector<8x1xf32> to vector<1x8x1xf32>
    %cst_32 = arith.constant dense<0.000000e+00> : vector<1xf32>
    %98 = vector.multi_reduction <add>, %97, %cst_32 [1, 2] : vector<1x8x1xf32> to vector<1xf32>
    %99 = vector.shape_cast %98 : vector<1xf32> to vector<1x1x1xf32>
    %100 = vector.extract %99[0, 0, 0] : f32 from vector<1x1x1xf32>
    %101 = vector.shape_cast %94 : vector<8x1xf32> to vector<1x8x1xf32>
    %cst_33 = arith.constant dense<0.000000e+00> : vector<1xf32>
    %102 = vector.multi_reduction <add>, %101, %cst_33 [1, 2] : vector<1x8x1xf32> to vector<1xf32>
    %103 = vector.shape_cast %102 : vector<1xf32> to vector<1x1x1xf32>
    %104 = vector.extract %103[0, 0, 0] : f32 from vector<1x1x1xf32>
    %cst_34 = arith.constant 1.000000e+00 : f32
    %105 = arith.maximumf %104, %cst_34 : f32
    %106 = arith.divf %100, %105 : f32
    %107 = vector.broadcast %106 : f32 to vector<8x1xf32>
    %cst_35 = arith.constant 0.000000e+00 : f32
    %108 = vector.broadcast %cst_35 : f32 to vector<8x94xf32>
    %109 = tpu.concatenate %35, %70, %61, %107, %108 in 1 : vector<8x32xf32>, vector<8x128xf32>, vector<8x1xf32>, vector<8x1xf32>, vector<8x94xf32> -> vector<8x256xf32>
    %c0_36 = arith.constant 0 : index
    %c0_37 = arith.constant 0 : index
    %110 = vector.load %arg5[%c0_36, %c0_37] : memref<8x256xf32, #tpu.memory_space<vmem>>, vector<8x256xf32>
    tpu.vector_store %arg5[%c0_36, %c0_37], %109 {strides = array<i32>} : memref<8x256xf32, #tpu.memory_space<vmem>>, vector<8x256xf32>,
    return
  }
}

</mosaic_0001>

<llo_original>
// kernel: coat_reid_forward.1
$region0: #{coat_reid_forward.1}
  #allocation0 [shape = 'u32[]', space=smem, size = 0x4, offset = 0x4, fixed_abs, tag = 'smem constant byte address 0x4 - core index']
  #allocation1 [shape = 'u32[72,128]{1,0:T(1,128)}', space=vmem, size = 0x9000, scoped, tag = 'internal scratch']
  %s0 = inlined_call_operand.vmem [shape: f32[8,192], index: 0, kind: input, shape index: {}]
  %s1 = inlined_call_operand.vmem [shape: f32[192,32], index: 1, kind: input, shape index: {}]
  %s2 = inlined_call_operand.vmem [shape: f32[32,128], index: 2, kind: input, shape index: {}]
  %s3 = inlined_call_operand.vmem [shape: f32[4,32], index: 3, kind: input, shape index: {}]
  %s4 = inlined_call_operand.vmem [shape: s32[8,1], index: 4, kind: input, shape index: {}]
  %s5 = inlined_call_operand.vmem [shape: f32[8,256], index: 5, kind: output, shape index: {}]
  %s6 = sld [smem:[#allocation0]]
  $region30: #{coat_reid_forward.1} parent=0
    _
  %s8 = ssub.s32 1, %s6
  %s9 = scalar_select 0, %s8, %s6
  // Predicated region
  $region2: #{coat_reid_forward.1} parent=0 // pred_check
    _
  $region3: #{coat_reid_forward.1} parent=0 // pred_check_branch
    %11 = sbr.rel (0) target = $region5
  $region4: #{coat_reid_forward.1} parent=0 // pred_region
    _
  $region5: #{coat_reid_forward.1} parent=0 // pred_fallthru
    _
  // Predicated region
  $region6: #{coat_reid_forward.1} parent=0 // pred_check
    _
  $region7: #{coat_reid_forward.1} parent=0 // pred_check_branch
    %13 = sbr.rel (0) target = $region9
  $region8: #{coat_reid_forward.1} parent=0 // pred_region
    _
  $region9: #{coat_reid_forward.1} parent=0 // pred_fallthru
    _
  // Predicated region
  $region10: #{coat_reid_forward.1} parent=0 // pred_check
    _
  $region11: #{coat_reid_forward.1} parent=0 // pred_check_branch
    %15 = sbr.rel (0) target = $region13
  $region12: #{coat_reid_forward.1} parent=0 // pred_region
    _
  $region13: #{coat_reid_forward.1} parent=0 // pred_fallthru
    _
  // Predicated region
  $region14: #{coat_reid_forward.1} parent=0 // pred_check
    _
  $region15: #{coat_reid_forward.1} parent=0 // pred_check_branch
    %17 = sbr.rel (0) target = $region17
  $region16: #{coat_reid_forward.1} parent=0 // pred_region
    _
  $region17: #{coat_reid_forward.1} parent=0 // pred_fallthru
    _
  // Predicated region
  $region18: #{coat_reid_forward.1} parent=0 // pred_check
    _
  $region19: #{coat_reid_forward.1} parent=0 // pred_check_branch
    %19 = sbr.rel (0) target = $region21
  $region20: #{coat_reid_forward.1} parent=0 // pred_region
    _
  $region21: #{coat_reid_forward.1} parent=0 // pred_fallthru
    _
  %v20 = vld [vmem:[%s0] sm:$0xff]
  %v21 = vld [vmem:[%s0 + $0x8] sm:$0xff]
  %v22 = vld [vmem:[%s1] sm:$0xff]
  %v23 = vld [vmem:[%s1 + $0x8] sm:$0xff]
  %v24 = vld [vmem:[%s1 + $0x10] sm:$0xff]
  %v25 = vld [vmem:[%s1 + $0x18] sm:$0xff]
  %v26 = vld [vmem:[%s1 + $0x20] sm:$0xff]
  %v27 = vld [vmem:[%s1 + $0x28] sm:$0xff]
  %v28 = vld [vmem:[%s1 + $0x30] sm:$0xff]
  %v29 = vld [vmem:[%s1 + $0x38] sm:$0xff]
  %v30 = vld [vmem:[%s1 + $0x40] sm:$0xff]
  %v31 = vld [vmem:[%s1 + $0x48] sm:$0xff]
  %v32 = vld [vmem:[%s1 + $0x50] sm:$0xff]
  %v33 = vld [vmem:[%s1 + $0x58] sm:$0xff]
  %v34 = vld [vmem:[%s1 + $0x60] sm:$0xff]
  %v35 = vld [vmem:[%s1 + $0x68] sm:$0xff]
  %v36 = vld [vmem:[%s1 + $0x70] sm:$0xff]
  %v37 = vld [vmem:[%s1 + $0x78] sm:$0xff]
  %v38 = vld [vmem:[%s1 + $0x80] sm:$0xff]
  %v39 = vld [vmem:[%s1 + $0x88] sm:$0xff]
  %v40 = vld [vmem:[%s1 + $0x90] sm:$0xff]
  %v41 = vld [vmem:[%s1 + $0x98] sm:$0xff]
  %v42 = vld [vmem:[%s1 + $0xa0] sm:$0xff]
  %v43 = vld [vmem:[%s1 + $0xa8] sm:$0xff]
  %v44 = vld [vmem:[%s1 + $0xb0] sm:$0xff]
  %v45 = vld [vmem:[%s1 + $0xb8] sm:$0xff]
  %v46 = vld [vmem:[%s3] sm:$0x1]
  %v47 = vperm.slane %v46, 0
  %vm48 = vcmask 523264
  %v50 = vsel %vm48, %v21, 0
  %52 = vmatpush.msra.mxu0 %v37
  %53 = vmatpush.msra.mxu0 %v36
  %54 = vmatpush.msra.mxu0 %v35
  %55 = vmatpush.msra.mxu0 %v34
  %56 = vmatpush.msra.mxu0 %v33
  %57 = vmatpush.msra.mxu0 %v32
  %58 = vmatpush.msra.mxu0 %v31
  %59 = vmatpush.msra.mxu0 %v30
  %60 = vmatpush.msra.mxu0 %v29
  %61 = vmatpush.msra.mxu0 %v28
  %62 = vmatpush.msra.mxu0 %v27
  %63 = vmatpush.msra.mxu0 %v26
  %64 = vmatpush.msra.mxu0 %v25
  %65 = vmatpush.msra.mxu0 %v24
  %66 = vmatpush.msra.mxu0 %v23
  %67 = vmatpush.msra.mxu0 %v22
  %68 = vmatmul.f32.gmra.mxu0 %v20
  %v69 = vpop.f32.mrf.mxu0
  %v70 = vadd.f32 %v47, %v69
  %71 = vdwg.mxu0
  %72 = vmatpush.msra.mxu0 0.0
  %73 = vmatpush.msra.mxu0 0.0
  %74 = vmatpush.msra.mxu0 0.0
  %75 = vmatpush.msra.mxu0 0.0
  %76 = vmatpush.msra.mxu0 0.0
  %77 = vmatpush.msra.mxu0 0.0
  %78 = vmatpush.msra.mxu0 0.0
  %79 = vmatpush.msra.mxu0 0.0
  %80 = vmatpush.msra.mxu0 %v45
  %81 = vmatpush.msra.mxu0 %v44
  %82 = vmatpush.msra.mxu0 %v43
  %83 = vmatpush.msra.mxu0 %v42
  %84 = vmatpush.msra.mxu0 %v41
  %85 = vmatpush.msra.mxu0 %v40
  %86 = vmatpush.msra.mxu0 %v39
  %87 = vmatpush.msra.mxu0 %v38
  %88 = vmatmul.f32.gmra.mxu0 %v50
  %v89 = vpop.f32.mrf.mxu0
  %v90 = vadd.f32 %v70, %v89
  %91 = vdwg.mxu0
  %vm92 = vcmask 261120
  %v93 = vsel %vm92, %v90, 0.0
  %v94 = vrot.slane %v93, 4
  %v95 = vadd.f32 %v93, %v94
  %v96 = vrot.slane %v95, 2
  %v97 = vadd.f32 %v95, %v96
  %v98 = vrot.slane %v97, 1
  %v99 = vadd.f32 %v97, %v98
  %v100 = vrcp.pop 8.0
  %v101 = vmul.f32 8.0, %v100
  %v102 = vsub.f32 1.0, %v101
  %v103 = vmul.f32 %v100, %v102
  %v104 = vadd.f32 %v100, %v103
  %vm105 = vweird.f32 %v100
  %v106 = vsel %vm105, %v100, %v104
  %v107 = vmul.f32 %v99, %v106
  %v108 = vsub.f32 %v90, %v107
  %v109 = vmul.f32 %v108, %v108
  %v110 = vsel %vm92, %v109, 0.0
  %v111 = vrot.slane %v110, 4
  %v112 = vadd.f32 %v110, %v111
  %v113 = vrot.slane %v112, 2
  %v114 = vadd.f32 %v112, %v113
  %v115 = vrot.slane %v114, 1
  %v116 = vadd.f32 %v114, %v115
  %v117 = vmul.f32 %v116, %v106
  %v118 = vld [vmem:[%s3 + $0x1] sm:$0x1]
  %v119 = vperm.slane %v118, 0
  %v120 = vmul.f32 %v119, %v108
  %v121 = vadd.f32 %v117, 1e-05
  %v122 = vrsqrt.pop %v121
  %v123 = vmul.f32 %v122, %v121
  %v124 = vmul.f32 %v123, %v122
  %v125 = vmul.f32 0.5, %v124
  %v126 = vsub.f32 1.5, %v125
  %v127 = vmul.f32 %v122, %v126
  %vm128 = vweird.f32 %v121
  %vm129 = vweird.f32 %v122
  %vm130 = vmor %vm128, %vm129
  %v131 = vsel %vm130, %v122, %v127
  %v132 = vmul.f32 %v120, %v131
  %v133 = vld [vmem:[%s3 + $0x2] sm:$0x1]
  %v134 = vperm.slane %v133, 0
  %v135 = vadd.f32 %v132, %v134
  %v136 = vmul.f32 %v135, %v135
  %v137 = vsel %vm92, %v136, 0.0
  %138 = vadd.xlane.f32.xlu0 %v137
  %v139 = vpop.xlane.xlu0 %138
  %v140 = vmax.f32 %v139, 1e-24
  %v141 = vrsqrt.pop %v140
  %v142 = vmul.f32 %v141, %v140
  %v143 = vmul.f32 %v142, %v141
  %v144 = vmul.f32 0.5, %v143
  %v145 = vsub.f32 1.5, %v144
  %v146 = vmul.f32 %v141, %v145
  %vm147 = vweird.f32 %v140
  %vm148 = vweird.f32 %v141
  %vm149 = vmor %vm147, %vm148
  %v150 = vsel %vm149, %v141, %v146
  %v151 = vmul.f32 %v135, %v150
  %v152 = vmul.f32 %v139, %v150
  %vm153 = vcmask 7168
  %v154 = vsel %vm153, %v152, 0.0
  %155 = vadd.xlane.f32.xlu0 %v154
  %v156 = vpop.xlane.xlu0 %155
  %v157 = vrot.slane %v156, 4
  %v158 = vadd.f32 %v156, %v157
  %v159 = vrot.slane %v158, 2
  %v160 = vadd.f32 %v158, %v159
  %v161 = vrot.slane %v160, 1
  %v162 = vadd.f32 %v160, %v161
  %s163 = vtos %v162
  %v164 = vrcp.pop 8.0
  %v165 = vmul.f32 8.0, %v164
  %v166 = vsub.f32 1.0, %v165
  %v167 = vmul.f32 %v164, %v166
  %v168 = vadd.f32 %v164, %v167
  %vm169 = vweird.f32 %v164
  %v170 = vsel %vm169, %v164, %v168
  %s171 = vtos %v170
  %s172 = smul.f32 %s163, %s171
  %v173 = vstv %s172
  %v174 = vsub.f32 %v152, %v173
  %v175 = vmul.f32 %v174, %v174
  %v176 = vsel %vm153, %v175, 0.0
  %177 = vadd.xlane.f32.xlu0 %v176
  %v178 = vpop.xlane.xlu0 %177
  %v179 = vrot.slane %v178, 4
  %v180 = vadd.f32 %v178, %v179
  %v181 = vrot.slane %v180, 2
  %v182 = vadd.f32 %v180, %v181
  %v183 = vrot.slane %v182, 1
  %v184 = vadd.f32 %v182, %v183
  %s185 = vtos %v184
  %v186 = vrcp.pop 8.0
  %v187 = vmul.f32 8.0, %v186
  %v188 = vsub.f32 1.0, %v187
  %v189 = vmul.f32 %v186, %v188
  %v190 = vadd.f32 %v186, %v189
  %vm191 = vweird.f32 %v186
  %v192 = vsel %vm191, %v186, %v190
  %s193 = vtos %v192
  %s194 = smul.f32 %s185, %s193
  %v195 = vld [vmem:[%s3 + $0x3] sm:$0x1]
  %s196 = vtos %v195
  %v197 = vstv %s196
  %v198 = vmul.f32 %v197, %v174
  %s199 = sadd.f32 %s194, 1e-05
  %v200 = vstv %s199
  %v201 = vrsqrt.pop %v200
  %v202 = vmul.f32 %v201, %v200
  %v203 = vmul.f32 %v202, %v201
  %v204 = vmul.f32 0.5, %v203
  %v205 = vsub.f32 1.5, %v204
  %v206 = vmul.f32 %v201, %v205
  %vm207 = vweird.f32 %v200
  %vm208 = vweird.f32 %v201
  %vm209 = vmor %vm207, %vm208
  %v210 = vsel %vm209, %v201, %v206
  %s211 = vtos %v210
  %v212 = vstv %s211
  %v213 = vmul.f32 %v198, %v212
  %215 = vrot.lane.b32.xlu0 %v195, 127
  %v216 = vpop.permute.xlu0 %215
  %s218 = vtos %v216
  %v219 = vstv %s218
  %v220 = vadd.f32 %v213, %v219
  %v221 = vld [vmem:[%s2] sm:$0xff]
  %v222 = vld [vmem:[%s2 + $0x8] sm:$0xff]
  %v223 = vld [vmem:[%s2 + $0x10] sm:$0xff]
  %v224 = vld [vmem:[%s2 + $0x18] sm:$0xff]
  %v226 = vsel %vm92, %v151, 0
  %228 = vmatpush.msra.mxu0 0.0
  %229 = vmatpush.msra.mxu0 0.0
  %230 = vmatpush.msra.mxu0 0.0
  %231 = vmatpush.msra.mxu0 0.0
  %232 = vmatpush.msra.mxu0 0.0
  %233 = vmatpush.msra.mxu0 0.0
  %234 = vmatpush.msra.mxu0 0.0
  %235 = vmatpush.msra.mxu0 0.0
  %236 = vmatpush.msra.mxu0 0.0
  %237 = vmatpush.msra.mxu0 0.0
  %238 = vmatpush.msra.mxu0 0.0
  %239 = vmatpush.msra.mxu0 0.0
  %240 = vmatpush.msra.mxu0 %v224
  %241 = vmatpush.msra.mxu0 %v223
  %242 = vmatpush.msra.mxu0 %v222
  %243 = vmatpush.msra.mxu0 %v221
  %244 = vmatmul.f32.gmra.mxu0 %v226
  %v245 = vpop.f32.mrf.mxu0
  %v246 = vadd.f32 0.0, %v245
  %247 = vdwg.mxu0
  %v248 = vmul.f32 %v246, 30.0
  %v249 = vlaneseq
  %v250 = vand.u32 %v249, 127
  %vm251 = vcmp.lt.s32.totalorder %v250, 24
  %v252 = vsel %vm251, %v248, -1e+30
  %v253 = vld [vmem:[%s4] sm:$0xff]
  %254 = vmax.xlane.f32.xlu0 %v252
  %v255 = vpop.xlane.xlu0 %254
  %v256 = vsub.f32 %v252, %v255
  %v257 = vmul.f32 %v256, 1.442695
  %v258 = vpow.pop %v257
  %259 = vadd.xlane.f32.xlu0 %v258
  %v260 = vpop.xlane.xlu0 %259
  %v261 = vlog2.pop %v260
  %v262 = vmul.f32 %v261, 0.6931472
  %v263 = vadd.f32 %v255, %v262
  %264 = vset.pattern.permute.xlu0 0
  %265 = vperm.xlu0 %264, %v253
  %v266 = vpop.permute.xlu0 %265
  %vm267 = vcmp.eq.s32.totalorder %v250, %v266
  %v268 = vsel %vm267, 1, 0
  %v269 = vcvt.s32.f32 %v268
  %v270 = vmul.f32 %v269, %v252
  %271 = vadd.xlane.f32.xlu0 %v270
  %v272 = vpop.xlane.xlu0 %271
  %vm273 = vcmp.ge.s32.totalorder %v253, 0
  %vm274 = vcmp.lt.s32.totalorder %v253, 16
  %vm275 = vmand %vm273, %vm274
  %v276 = vsel %vm275, 1, 0
  %v277 = vcvt.s32.f32 %v276
  %v278 = vsub.f32 %v263, %v272
  %v279 = vmul.f32 %v278, %v277
  %v280 = vsel %vm153, %v279, 0.0
  %281 = vadd.xlane.f32.xlu0 %v280
  %v282 = vpop.xlane.xlu0 %281
  %v283 = vrot.slane %v282, 4
  %v284 = vadd.f32 %v282, %v283
  %v285 = vrot.slane %v284, 2
  %v286 = vadd.f32 %v284, %v285
  %v287 = vrot.slane %v286, 1
  %v288 = vadd.f32 %v286, %v287
  %s289 = vtos %v288
  %v290 = vsel %vm153, %v277, 0.0
  %291 = vadd.xlane.f32.xlu0 %v290
  %v292 = vpop.xlane.xlu0 %291
  %v293 = vrot.slane %v292, 4
  %v294 = vadd.f32 %v292, %v293
  %v295 = vrot.slane %v294, 2
  %v296 = vadd.f32 %v294, %v295
  %v297 = vrot.slane %v296, 1
  %v298 = vadd.f32 %v296, %v297
  %s299 = vtos %v298
  %s300 = smax.f32 %s299, 1.0
  %v301 = vstv %s300
  %v302 = vrcp.pop %v301
  %v303 = vmul.f32 %v301, %v302
  %v304 = vsub.f32 1.0, %v303
  %v305 = vmul.f32 %v302, %v304
  %v306 = vadd.f32 %v302, %v305
  %vm307 = vweird.f32 %v301
  %vm308 = vweird.f32 %v302
  %vm309 = vmor %vm307, %vm308
  %v310 = vsel %vm309, %v302, %v306
  %v311 = vand.u32 2147483647, %v301
  %vm312 = vcmp.eq.f32.partialorder %v311, 8.507059e+37
  %v313 = vand.u32 %v301, 2147483648
  %v314 = vor.u32 1.1754944e-38, %v313
  %v315 = vsel %vm312, %v314, %v310
  %s316 = vtos %v315
  %s317 = smul.f32 %s289, %s316
  %v318 = vstv %s317
  %320 = vrot.lane.b32.xlu0 %v252, 32
  %v321 = vpop.permute.xlu0 %320
  %v323 = vsel %vm92, %v151, %v321
  %v324 = vsel %vm92, %v321, %v220
  %vm325 = vcmask 269312
  %v326 = vsel %vm325, %v324, %v318
  %vm327 = vcmask 277504
  %v328 = vsel %vm327, %v326, 0.0
  %329 = vst [vmem:[%s5] sm:$0xff] %v323
  %330 = vst [vmem:[%s5 + $0x8] sm:$0xff] %v328
  // Predicated region
  $region22: #{coat_reid_forward.1} parent=0 // pred_check
    _
  $region23: #{coat_reid_forward.1} parent=0 // pred_check_branch
    %332 = sbr.rel (0) target = $region25
  $region24: #{coat_reid_forward.1} parent=0 // pred_region
    _
  $region25: #{coat_reid_forward.1} parent=0 // pred_fallthru
    _
  // Predicated region
  $region26: #{coat_reid_forward.1} parent=0 // pred_check
    _
  $region27: #{coat_reid_forward.1} parent=0 // pred_check_branch
    %334 = sbr.rel (0) target = $region29
  $region28: #{coat_reid_forward.1} parent=0 // pred_region
    _
  $region29: #{coat_reid_forward.1} parent=0 // pred_fallthru
    _

</llo_original>
